<compile_context>
chip_gen: v6e
topology: v6e:2x2x1
jax: 0.10.0
libtpu: 0.0.40
codegen_flags: <defaults>
</compile_context>

<pallas_src>
import math
from functools import partial

import jax
import jax.numpy as jnp
from jax.experimental import pallas as pl
from jax.experimental.pallas import tpu as pltpu

LANE = 128
_SLAB = 512  # hidden-dim chunk width (f32 intermediate is (tm, _SLAB), not (tm, H_p))


def _round_up(x, m):
    return ((x + m - 1) // m) * m


def _cdiv(a, b):
    return -(-a // b)


def _physical_vmem_bytes():
    # Per-TensorCore VMEM. Fall back to the smallest current value (v7x: 64 MiB) so
    # the derived limit is safe on every generation if the query is unavailable.
    try:
        return int(pltpu.get_tpu_info().vmem_capacity_bytes)
    except Exception:
        return 64 * 1024 * 1024


def _pad_to(a, shape):
    # Skip the pad (a separate HBM read+write of the whole array) when already aligned.
    if tuple(a.shape) == tuple(shape):
        return a
    return jnp.pad(a, tuple((0, t - s) for s, t in zip(a.shape, shape)))


def _make_mlp_kernel(h_p, num_slabs):
    inv_sqrt2 = 1.0 / math.sqrt(2.0)

    def kernel(x_ref, w1_ref, b1_ref, w2_ref, b2_ref, o_ref, acc_ref):
        # x_ref: (tm, C_in_p) bf16 row tile.  w1/w2: bf16, resident in VMEM.
        # b1/b2: f32.  acc_ref: (tm, C_out_p) f32 scratch accumulator.
        x = x_ref[...]

        # Initialize the accumulator with the fc2 bias (saves a separate final add).
        acc_ref[...] = jnp.broadcast_to(b2_ref[...], acc_ref.shape)

        # Chunk the hidden dim: fc1-slab -> GELU-slab -> fc2-slab-accumulate.
        # Static unroll (num_slabs is small) keeps all slice offsets static and lets
        # the scheduler overlap slab k+1's MXU matmuls with slab k's GELU/cast.
        for s in range(num_slabs):
            lo = s * _SLAB
            hi = min(lo + _SLAB, h_p)
            h = jnp.dot(x, w1_ref[:, lo:hi], preferred_element_type=jnp.float32)
            h = h + b1_ref[:, lo:hi]
            # Exact GELU (torch.nn.GELU default): 0.5*x*(1+erf(x/sqrt(2))), kept f32.
            # TODO(synk): optional bf16 erf polynomial on v6e/v7x if tolerance allows.
            h = 0.5 * h * (1.0 + jax.lax.erf(h * inv_sqrt2))
            acc_ref[...] += jnp.dot(h.astype(w2_ref.dtype), w2_ref[lo:hi, :],
                                    preferred_element_type=jnp.float32)

        # dropout(p=0.0) is identity at inference.
        # TODO(synk): stochastic dropout (p>0, training) would need pltpu.prng_* masking.
        o_ref[...] = acc_ref[...].astype(o_ref.dtype)

    return kernel


@partial(jax.jit, static_argnames=("block_m", "resident_weights"))
def _mlp_pallas_impl(x, w1, b1, w2, b2, *, block_m, resident_weights):
    B, N, C_in = x.shape
    H = w1.shape[1]
    C_out = w2.shape[1]
    out_dtype = x.dtype
    out_itemsize = jnp.dtype(out_dtype).itemsize

    M = B * N
    C_in_p = _round_up(C_in, LANE)
    H_p = _round_up(H, LANE)
    C_out_p = _round_up(C_out, LANE)

    phys_vmem = _physical_vmem_bytes()

    # Row tiling. v5e/v6e (>=100 MiB VMEM): larger tiles amortize per-grid-step
    # overhead; v7x (64 MiB) stays at 256 so resident weights + f32 slab still fit.
    if phys_vmem >= 100 * 1024 * 1024 and M >= 2048:
        block_m = max(block_m, 512)
    tm = _round_up(min(block_m, _round_up(M, 16)), 16)
    # Megacore: if there is enough work but only one row tile, split so both TCs run.
    if M > 256 and _round_up(M, tm) // tm < 2:
        tm = _round_up(_cdiv(M, 2), 16)
    M_p = _round_up(M, tm)

    # Flatten + pad (only when needed) + cast to bf16 for the MXU path.
    x2d = _pad_to(x.reshape(M, C_in), (M_p, C_in_p)).astype(jnp.bfloat16)
    w1_p = _pad_to(w1, (C_in_p, H_p)).astype(jnp.bfloat16)
    w2_p = _pad_to(w2, (H_p, C_out_p)).astype(jnp.bfloat16)
    b1_p = _pad_to(b1.reshape(1, H), (1, H_p)).astype(jnp.float32)
    b2_p = _pad_to(b2.reshape(1, C_out), (1, C_out_p)).astype(jnp.float32)

    num_slabs = max(1, _cdiv(H_p, _SLAB))
    kernel = _make_mlp_kernel(H_p, num_slabs)

    if resident_weights:
        # Single copy of each weight/bias, resident in VMEM for the whole grid
        # (no pipeline double-buffering of the grid-invariant operands).
        weight_specs = [
            pl.BlockSpec(memory_space=pltpu.MemorySpace.VMEM),  # w1
            pl.BlockSpec(memory_space=pltpu.MemorySpace.VMEM),  # b1
            pl.BlockSpec(memory_space=pltpu.MemorySpace.VMEM),  # w2
            pl.BlockSpec(memory_space=pltpu.MemorySpace.VMEM),  # b2
        ]
        w_copies = 1
    else:
        # Fallback: grid-invariant blocked specs (pipeline double-buffers them).
        weight_specs = [
            pl.BlockSpec((C_in_p, H_p), lambda i: (0, 0)),
            pl.BlockSpec((1, H_p), lambda i: (0, 0)),
            pl.BlockSpec((H_p, C_out_p), lambda i: (0, 0)),
            pl.BlockSpec((1, C_out_p), lambda i: (0, 0)),
        ]
        w_copies = 2

    th = min(_SLAB, H_p)
    vmem_est = (w_copies * (w1_p.size + w2_p.size) * 2          # bf16 weights
                + w_copies * (b1_p.size + b2_p.size) * 4        # f32 biases
                + 2 * tm * C_in_p * 2                           # double-buffered x tiles
                + 2 * tm * C_out_p * out_itemsize               # double-buffered out tiles
                + tm * th * 4                                   # f32 fc1/GELU slab
                + tm * C_out_p * 4)                             # f32 accumulator scratch
    # Cap at ~85% of physical per-core VMEM: headroom for compiler scratch on v7x,
    # while allowing ~108 MiB on v5e/v6e instead of the old 64 MiB hard cap.
    vmem_cap = max(32 * 1024 * 1024, int(0.85 * phys_vmem))
    vmem_limit = min(max(int(vmem_est * 1.4) + (4 << 20), 32 * 1024 * 1024), vmem_cap)

    flops = 2 * M_p * (C_in_p * H_p + H_p * C_out_p)
    transcendentals = M_p * H_p
    bytes_accessed = (x2d.size * 2 + w1_p.size * 2 + w2_p.size * 2
                      + b1_p.size * 4 + b2_p.size * 4
                      + M_p * C_out_p * out_itemsize)

    # TODO(synk): int8 (v5e/v6e) / fp8 (v7x) weight-only path for small-M,
    # weight-HBM-bound inference calls.

    grid = (M_p // tm,)
    out2d = pl.pallas_call(
        kernel,
        out_shape=jax.ShapeDtypeStruct((M_p, C_out_p), out_dtype),
        grid_spec=pltpu.PrefetchScalarGridSpec(
            num_scalar_prefetch=0,
            grid=grid,
            in_specs=[pl.BlockSpec((tm, C_in_p), lambda i: (i, 0))] + weight_specs,
            out_specs=pl.BlockSpec((tm, C_out_p), lambda i: (i, 0)),
            scratch_shapes=[pltpu.VMEM((tm, C_out_p), jnp.float32)],
        ),
        compiler_params=pltpu.CompilerParams(
            dimension_semantics=("parallel",),
            vmem_limit_bytes=vmem_limit,
        ),
        cost_estimate=pl.CostEstimate(
            flops=flops,
            transcendentals=transcendentals,
            bytes_accessed=bytes_accessed,
        ),
    )(x2d, w1_p, b1_p, w2_p, b2_p)

    if M_p != M or C_out_p != C_out:
        out2d = out2d[:M, :C_out]
    return out2d.reshape(B, N, C_out)


def mlp_pallas(x, w1, b1, w2, b2, *, block_m=256):
    """PVT MLP forward: fc2(GELU(fc1(x))). x: (B, N, C_in)."""
    try:
        return _mlp_pallas_impl(x, w1, b1, w2, b2, block_m=block_m,
                                resident_weights=True)
    except Exception:
        # Graceful degradation if whole-array VMEM operand placement is not
        # supported by the installed jax/Mosaic: use pipelined weight blocks.
        return _mlp_pallas_impl(x, w1, b1, w2, b2, block_m=block_m,
                                resident_weights=False)


def _reference(x, w1, b1, w2, b2):
    h = jnp.einsum("bnc,ch->bnh", x, w1) + b1
    h = 0.5 * h * (1.0 + jax.lax.erf(h / jnp.sqrt(2.0)))
    return jnp.einsum("bnh,ho->bno", h, w2) + b2


if __name__ == "__main__":
    # Small shapes consistent with the PVT MLP forward: token tensor (B, N, C).
    B, N = 2, 8
    in_features = 32
    hidden_features = 64
    out_features = in_features  # default: out_features = in_features

    key = jax.random.PRNGKey(0)
    kx, kw1, kb1, kw2, kb2 = jax.random.split(key, 5)

    x = jax.random.normal(kx, (B, N, in_features), dtype=jnp.float32)

    # Deterministic init mirroring nn.Linear's uniform(-1/sqrt(fan_in), 1/sqrt(fan_in)).
    lim1 = 1.0 / math.sqrt(in_features)
    w1 = jax.random.uniform(kw1, (in_features, hidden_features),
                            minval=-lim1, maxval=lim1, dtype=jnp.float32)
    b1 = jax.random.uniform(kb1, (hidden_features,),
                            minval=-lim1, maxval=lim1, dtype=jnp.float32)
    lim2 = 1.0 / math.sqrt(hidden_features)
    w2 = jax.random.uniform(kw2, (hidden_features, out_features),
                            minval=-lim2, maxval=lim2, dtype=jnp.float32)
    b2 = jax.random.uniform(kb2, (out_features,),
                            minval=-lim2, maxval=lim2, dtype=jnp.float32)

    out = mlp_pallas(x, w1, b1, w2, b2)
    jax.block_until_ready(out)

    ref = _reference(x, w1, b1, w2, b2)
    assert out.shape == (B, N, out_features)
    # bf16 MXU path vs. f32 reference -> loosened tolerance.
    assert jnp.allclose(out, ref, atol=5e-2, rtol=5e-2), "mismatch vs reference"

    print("KERNEL_OK")
</pallas_src>

<mosaic_0001>
module attributes {stable_mosaic.version = 11 : i64} {
  func.func @kernel(%arg0: i32, %arg1: memref<16x128xbf16, #tpu.memory_space<vmem>>, %arg2: memref<128x128xbf16, #tpu.memory_space<vmem>>, %arg3: memref<1x128xf32, #tpu.memory_space<vmem>>, %arg4: memref<128x128xbf16, #tpu.memory_space<vmem>>, %arg5: memref<1x128xf32, #tpu.memory_space<vmem>>, %arg6: memref<16x128xf32, #tpu.memory_space<vmem>>, %arg7: memref<16x128xf32, #tpu.memory_space<vmem>>) attributes {dimension_semantics = [#tpu.dimension_semantics<parallel>], iteration_bounds = array<i64: 1>, scalar_prefetch = 0 : i64, scratch_operands = 1 : i64, tpu.core_type = #tpu.core_type<tc>, window_params = [{transform_indices = @transform_0, window_bounds = array<i64: 16, 128>}, {pipeline_mode = #tpu.pipeline_mode<synchronous>, transform_indices = @transform_1, window_bounds = array<i64: 128, 128>}, {pipeline_mode = #tpu.pipeline_mode<synchronous>, transform_indices = @transform_2, window_bounds = array<i64: 1, 128>}, {pipeline_mode = #tpu.pipeline_mode<synchronous>, transform_indices = @transform_3, window_bounds = array<i64: 128, 128>}, {pipeline_mode = #tpu.pipeline_mode<synchronous>, transform_indices = @transform_4, window_bounds = array<i64: 1, 128>}, {transform_indices = @transform_5, window_bounds = array<i64: 16, 128>}]} {
    %c0 = arith.constant 0 : index
    %c0_0 = arith.constant 0 : index
    %0 = vector.load %arg1[%c0, %c0_0] : memref<16x128xbf16, #tpu.memory_space<vmem>>, vector<16x128xbf16>
    %c0_1 = arith.constant 0 : index
    %c0_2 = arith.constant 0 : index
    %1 = vector.load %arg5[%c0_1, %c0_2] : memref<1x128xf32, #tpu.memory_space<vmem>>, vector<1x128xf32>
    %2 = vector.shape_cast %1 : vector<1x128xf32> to vector<1x128xf32>
    %3 = vector.broadcast %2 : vector<1x128xf32> to vector<16x128xf32>
    %c0_3 = arith.constant 0 : index
    %c0_4 = arith.constant 0 : index
    %4 = vector.load %arg7[%c0_3, %c0_4] : memref<16x128xf32, #tpu.memory_space<vmem>>, vector<16x128xf32>
    tpu.vector_store %arg7[%c0_3, %c0_4], %3 {strides = array<i32>} : memref<16x128xf32, #tpu.memory_space<vmem>>, vector<16x128xf32>,
    %c0_5 = arith.constant 0 : index
    %c0_6 = arith.constant 0 : index
    %5 = vector.load %arg2[%c0_5, %c0_6] : memref<128x128xbf16, #tpu.memory_space<vmem>>, vector<128x128xbf16>
    %cst = arith.constant dense<0.000000e+00> : vector<16x128xf32>
    %6 = tpu.matmul %0, %5, %cst {dimension_numbers = #tpu.dot_dimension_numbers<[1], [0], [0], [1], [0, 0, 1, 1], [], []>} : vector<16x128xbf16>, vector<128x128xbf16>, vector<16x128xf32> -> vector<16x128xf32>
    %c0_7 = arith.constant 0 : index
    %c0_8 = arith.constant 0 : index
    %7 = vector.load %arg3[%c0_7, %c0_8] : memref<1x128xf32, #tpu.memory_space<vmem>>, vector<1x128xf32>
    %8 = vector.broadcast %7 : vector<1x128xf32> to vector<16x128xf32>
    %9 = arith.addf %6, %8 : vector<16x128xf32>
    %cst_9 = arith.constant 5.000000e-01 : f32
    %10 = vector.broadcast %cst_9 : f32 to vector<16x128xf32>
    %11 = arith.mulf %10, %9 : vector<16x128xf32>
    %cst_10 = arith.constant 0.707106769 : f32
    %12 = vector.broadcast %cst_10 : f32 to vector<16x128xf32>
    %13 = arith.mulf %9, %12 : vector<16x128xf32>
    %14 = math.erf %13 : vector<16x128xf32>
    %cst_11 = arith.constant 1.000000e+00 : f32
    %15 = vector.broadcast %cst_11 : f32 to vector<16x128xf32>
    %16 = arith.addf %15, %14 : vector<16x128xf32>
    %17 = arith.mulf %11, %16 : vector<16x128xf32>
    %c0_12 = arith.constant 0 : index
    %c0_13 = arith.constant 0 : index
    %18 = vector.load %arg7[%c0_12, %c0_13] : memref<16x128xf32, #tpu.memory_space<vmem>>, vector<16x128xf32>
    %19 = arith.truncf %17 : vector<16x128xf32> to vector<16x128xbf16>
    %c0_14 = arith.constant 0 : index
    %c0_15 = arith.constant 0 : index
    %20 = vector.load %arg4[%c0_14, %c0_15] : memref<128x128xbf16, #tpu.memory_space<vmem>>, vector<128x128xbf16>
    %cst_16 = arith.constant dense<0.000000e+00> : vector<16x128xf32>
    %21 = tpu.matmul %19, %20, %cst_16 {dimension_numbers = #tpu.dot_dimension_numbers<[1], [0], [0], [1], [0, 0, 1, 1], [], []>} : vector<16x128xbf16>, vector<128x128xbf16>, vector<16x128xf32> -> vector<16x128xf32>
    %22 = arith.addf %18, %21 : vector<16x128xf32>
    %c0_17 = arith.constant 0 : index
    %c0_18 = arith.constant 0 : index
    %23 = vector.load %arg7[%c0_17, %c0_18] : memref<16x128xf32, #tpu.memory_space<vmem>>, vector<16x128xf32>
    tpu.vector_store %arg7[%c0_17, %c0_18], %22 {strides = array<i32>} : memref<16x128xf32, #tpu.memory_space<vmem>>, vector<16x128xf32>,
    %c0_19 = arith.constant 0 : index
    %c0_20 = arith.constant 0 : index
    %24 = vector.load %arg7[%c0_19, %c0_20] : memref<16x128xf32, #tpu.memory_space<vmem>>, vector<16x128xf32>
    %c0_21 = arith.constant 0 : index
    %c0_22 = arith.constant 0 : index
    %25 = vector.load %arg6[%c0_21, %c0_22] : memref<16x128xf32, #tpu.memory_space<vmem>>, vector<16x128xf32>
    tpu.vector_store %arg6[%c0_21, %c0_22], %24 {strides = array<i32>} : memref<16x128xf32, #tpu.memory_space<vmem>>, vector<16x128xf32>,
    return
  }
  func.func @transform_0(%arg0: i32) -> (i32, i32) {
    %c0_i32 = arith.constant 0 : i32
    %c0_i32_0 = arith.constant 0 : i32
    return %arg0, %c0_i32 : i32, i32
  }
  func.func @transform_1(%arg0: i32) -> (i32, i32) {
    %c0_i32 = arith.constant 0 : i32
    %c0_i32_0 = arith.constant 0 : i32
    %c0_i32_1 = arith.constant 0 : i32
    return %c0_i32, %c0_i32_0 : i32, i32
  }
  func.func @transform_2(%arg0: i32) -> (i32, i32) {
    %c0_i32 = arith.constant 0 : i32
    %c0_i32_0 = arith.constant 0 : i32
    %c0_i32_1 = arith.constant 0 : i32
    return %c0_i32, %c0_i32_0 : i32, i32
  }
  func.func @transform_3(%arg0: i32) -> (i32, i32) {
    %c0_i32 = arith.constant 0 : i32
    %c0_i32_0 = arith.constant 0 : i32
    %c0_i32_1 = arith.constant 0 : i32
    return %c0_i32, %c0_i32_0 : i32, i32
  }
  func.func @transform_4(%arg0: i32) -> (i32, i32) {
    %c0_i32 = arith.constant 0 : i32
    %c0_i32_0 = arith.constant 0 : i32
    %c0_i32_1 = arith.constant 0 : i32
    return %c0_i32, %c0_i32_0 : i32, i32
  }
  func.func @transform_5(%arg0: i32) -> (i32, i32) {
    %c0_i32 = arith.constant 0 : i32
    %c0_i32_0 = arith.constant 0 : i32
    return %arg0, %c0_i32 : i32, i32
  }
}

module attributes {stable_mosaic.version = 11 : i64} {
  func.func @kernel(%arg0: i32, %arg1: memref<16x128xbf16, #tpu.memory_space<vmem>>, %arg2: memref<128x128xbf16, #tpu.memory_space<vmem>>, %arg3: memref<1x128xf32, #tpu.memory_space<vmem>>, %arg4: memref<128x128xbf16, #tpu.memory_space<vmem>>, %arg5: memref<1x128xf32, #tpu.memory_space<vmem>>, %arg6: memref<16x128xf32, #tpu.memory_space<vmem>>, %arg7: memref<16x128xf32, #tpu.memory_space<vmem>>) attributes {dimension_semantics = [#tpu.dimension_semantics<parallel>], iteration_bounds = array<i64: 1>, scalar_prefetch = 0 : i64, scratch_operands = 1 : i64, tpu.core_type = #tpu.core_type<tc>, window_params = [{transform_indices = @transform_0, window_bounds = array<i64: 16, 128>}, {pipeline_mode = #tpu.pipeline_mode<synchronous>, transform_indices = @transform_1, window_bounds = array<i64: 128, 128>}, {pipeline_mode = #tpu.pipeline_mode<synchronous>, transform_indices = @transform_2, window_bounds = array<i64: 1, 128>}, {pipeline_mode = #tpu.pipeline_mode<synchronous>, transform_indices = @transform_3, window_bounds = array<i64: 128, 128>}, {pipeline_mode = #tpu.pipeline_mode<synchronous>, transform_indices = @transform_4, window_bounds = array<i64: 1, 128>}, {transform_indices = @transform_5, window_bounds = array<i64: 16, 128>}]} {
    %c0 = arith.constant 0 : index
    %c0_0 = arith.constant 0 : index
    %0 = vector.load %arg1[%c0, %c0_0] : memref<16x128xbf16, #tpu.memory_space<vmem>>, vector<16x128xbf16>
    %c0_1 = arith.constant 0 : index
    %c0_2 = arith.constant 0 : index
    %1 = vector.load %arg5[%c0_1, %c0_2] : memref<1x128xf32, #tpu.memory_space<vmem>>, vector<1x128xf32>
    %2 = vector.shape_cast %1 : vector<1x128xf32> to vector<1x128xf32>
    %3 = vector.broadcast %2 : vector<1x128xf32> to vector<16x128xf32>
    %c0_3 = arith.constant 0 : index
    %c0_4 = arith.constant 0 : index
    %4 = vector.load %arg7[%c0_3, %c0_4] : memref<16x128xf32, #tpu.memory_space<vmem>>, vector<16x128xf32>
    tpu.vector_store %arg7[%c0_3, %c0_4], %3 {strides = array<i32>} : memref<16x128xf32, #tpu.memory_space<vmem>>, vector<16x128xf32>,
    %c0_5 = arith.constant 0 : index
    %c0_6 = arith.constant 0 : index
    %5 = vector.load %arg2[%c0_5, %c0_6] : memref<128x128xbf16, #tpu.memory_space<vmem>>, vector<128x128xbf16>
    %cst = arith.constant dense<0.000000e+00> : vector<16x128xf32>
    %6 = tpu.matmul %0, %5, %cst {dimension_numbers = #tpu.dot_dimension_numbers<[1], [0], [0], [1], [0, 0, 1, 1], [], []>} : vector<16x128xbf16>, vector<128x128xbf16>, vector<16x128xf32> -> vector<16x128xf32>
    %c0_7 = arith.constant 0 : index
    %c0_8 = arith.constant 0 : index
    %7 = vector.load %arg3[%c0_7, %c0_8] : memref<1x128xf32, #tpu.memory_space<vmem>>, vector<1x128xf32>
    %8 = vector.broadcast %7 : vector<1x128xf32> to vector<16x128xf32>
    %9 = arith.addf %6, %8 : vector<16x128xf32>
    %cst_9 = arith.constant 5.000000e-01 : f32
    %10 = vector.broadcast %cst_9 : f32 to vector<16x128xf32>
    %11 = arith.mulf %10, %9 : vector<16x128xf32>
    %cst_10 = arith.constant 0.707106769 : f32
    %12 = vector.broadcast %cst_10 : f32 to vector<16x128xf32>
    %13 = arith.mulf %9, %12 : vector<16x128xf32>
    %14 = math.erf %13 : vector<16x128xf32>
    %cst_11 = arith.constant 1.000000e+00 : f32
    %15 = vector.broadcast %cst_11 : f32 to vector<16x128xf32>
    %16 = arith.addf %15, %14 : vector<16x128xf32>
    %17 = arith.mulf %11, %16 : vector<16x128xf32>
    %c0_12 = arith.constant 0 : index
    %c0_13 = arith.constant 0 : index
    %18 = vector.load %arg7[%c0_12, %c0_13] : memref<16x128xf32, #tpu.memory_space<vmem>>, vector<16x128xf32>
    %19 = arith.truncf %17 : vector<16x128xf32> to vector<16x128xbf16>
    %c0_14 = arith.constant 0 : index
    %c0_15 = arith.constant 0 : index
    %20 = vector.load %arg4[%c0_14, %c0_15] : memref<128x128xbf16, #tpu.memory_space<vmem>>, vector<128x128xbf16>
    %cst_16 = arith.constant dense<0.000000e+00> : vector<16x128xf32>
    %21 = tpu.matmul %19, %20, %cst_16 {dimension_numbers = #tpu.dot_dimension_numbers<[1], [0], [0], [1], [0, 0, 1, 1], [], []>} : vector<16x128xbf16>, vector<128x128xbf16>, vector<16x128xf32> -> vector<16x128xf32>
    %22 = arith.addf %18, %21 : vector<16x128xf32>
    %c0_17 = arith.constant 0 : index
    %c0_18 = arith.constant 0 : index
    %23 = vector.load %arg7[%c0_17, %c0_18] : memref<16x128xf32, #tpu.memory_space<vmem>>, vector<16x128xf32>
    tpu.vector_store %arg7[%c0_17, %c0_18], %22 {strides = array<i32>} : memref<16x128xf32, #tpu.memory_space<vmem>>, vector<16x128xf32>,
    %c0_19 = arith.constant 0 : index
    %c0_20 = arith.constant 0 : index
    %24 = vector.load %arg7[%c0_19, %c0_20] : memref<16x128xf32, #tpu.memory_space<vmem>>, vector<16x128xf32>
    %c0_21 = arith.constant 0 : index
    %c0_22 = arith.constant 0 : index
    %25 = vector.load %arg6[%c0_21, %c0_22] : memref<16x128xf32, #tpu.memory_space<vmem>>, vector<16x128xf32>
    tpu.vector_store %arg6[%c0_21, %c0_22], %24 {strides = array<i32>} : memref<16x128xf32, #tpu.memory_space<vmem>>, vector<16x128xf32>,
    return
  }
  func.func @transform_0(%arg0: i32) -> (i32, i32) {
    %c0_i32 = arith.constant 0 : i32
    %c0_i32_0 = arith.constant 0 : i32
    return %arg0, %c0_i32 : i32, i32
  }
  func.func @transform_1(%arg0: i32) -> (i32, i32) {
    %c0_i32 = arith.constant 0 : i32
    %c0_i32_0 = arith.constant 0 : i32
    %c0_i32_1 = arith.constant 0 : i32
    return %c0_i32, %c0_i32_0 : i32, i32
  }
  func.func @transform_2(%arg0: i32) -> (i32, i32) {
    %c0_i32 = arith.constant 0 : i32
    %c0_i32_0 = arith.constant 0 : i32
    %c0_i32_1 = arith.constant 0 : i32
    return %c0_i32, %c0_i32_0 : i32, i32
  }
  func.func @transform_3(%arg0: i32) -> (i32, i32) {
    %c0_i32 = arith.constant 0 : i32
    %c0_i32_0 = arith.constant 0 : i32
    %c0_i32_1 = arith.constant 0 : i32
    return %c0_i32, %c0_i32_0 : i32, i32
  }
  func.func @transform_4(%arg0: i32) -> (i32, i32) {
    %c0_i32 = arith.constant 0 : i32
    %c0_i32_0 = arith.constant 0 : i32
    %c0_i32_1 = arith.constant 0 : i32
    return %c0_i32, %c0_i32_0 : i32, i32
  }
  func.func @transform_5(%arg0: i32) -> (i32, i32) {
    %c0_i32 = arith.constant 0 : i32
    %c0_i32_0 = arith.constant 0 : i32
    return %arg0, %c0_i32 : i32, i32
  }
}

</mosaic_0001>

<llo_original>
// kernel: _mlp_pallas_impl.1
$region0: #{_mlp_pallas_impl.1}
  #allocation0 [shape = 'u32[]', space=smem, size = 0x4, offset = 0x4, fixed_abs, tag = 'smem constant byte address 0x4 - core index']
  #allocation1 [shape = 'u32[144,128]{1,0:T(1,128)}', space=vmem, size = 0x12000, scoped, tag = 'internal scratch']
  #allocation2 [shape = 'f32[16,128]{1,0:T(8,128)}', space=vmem, size = 0x2000, scoped, tag = 'scratch operand']
  %s0 = inlined_call_operand.vmem [shape: bf16[16,128], index: 0, kind: input, shape index: {}]
  %s1 = inlined_call_operand.vmem [shape: bf16[128,128], index: 1, kind: input, shape index: {}]
  %s2 = inlined_call_operand.vmem [shape: f32[1,128], index: 2, kind: input, shape index: {}]
  %s3 = inlined_call_operand.vmem [shape: bf16[128,128], index: 3, kind: input, shape index: {}]
  %s4 = inlined_call_operand.vmem [shape: f32[1,128], index: 4, kind: input, shape index: {}]
  %s5 = inlined_call_operand.vmem [shape: f32[16,128], index: 5, kind: output, shape index: {}]
  %s6 = sld [smem:[#allocation0]]
  $region30: #{_mlp_pallas_impl.1} parent=0
    _
  %s8 = ssub.s32 1, %s6
  %s9 = scalar_select 0, %s8, %s6
  // Predicated region
  $region2: #{_mlp_pallas_impl.1} parent=0 // pred_check
    _
  $region3: #{_mlp_pallas_impl.1} parent=0 // pred_check_branch
    %11 = sbr.rel (0) target = $region5
  $region4: #{_mlp_pallas_impl.1} parent=0 // pred_region
    _
  $region5: #{_mlp_pallas_impl.1} parent=0 // pred_fallthru
    _
  // Predicated region
  $region6: #{_mlp_pallas_impl.1} parent=0 // pred_check
    _
  $region7: #{_mlp_pallas_impl.1} parent=0 // pred_check_branch
    %13 = sbr.rel (0) target = $region9
  $region8: #{_mlp_pallas_impl.1} parent=0 // pred_region
    _
  $region9: #{_mlp_pallas_impl.1} parent=0 // pred_fallthru
    _
  // Predicated region
  $region10: #{_mlp_pallas_impl.1} parent=0 // pred_check
    _
  $region11: #{_mlp_pallas_impl.1} parent=0 // pred_check_branch
    %15 = sbr.rel (0) target = $region13
  $region12: #{_mlp_pallas_impl.1} parent=0 // pred_region
    _
  $region13: #{_mlp_pallas_impl.1} parent=0 // pred_fallthru
    _
  // Predicated region
  $region14: #{_mlp_pallas_impl.1} parent=0 // pred_check
    _
  $region15: #{_mlp_pallas_impl.1} parent=0 // pred_check_branch
    %17 = sbr.rel (0) target = $region17
  $region16: #{_mlp_pallas_impl.1} parent=0 // pred_region
    _
  $region17: #{_mlp_pallas_impl.1} parent=0 // pred_fallthru
    _
  // Predicated region
  $region18: #{_mlp_pallas_impl.1} parent=0 // pred_check
    _
  $region19: #{_mlp_pallas_impl.1} parent=0 // pred_check_branch
    %19 = sbr.rel (0) target = $region21
  $region20: #{_mlp_pallas_impl.1} parent=0 // pred_region
    _
  $region21: #{_mlp_pallas_impl.1} parent=0 // pred_fallthru
    _
  %v21 = vld [vmem:[%s0] sm:$0xf]
  %v22 = vld [vmem:[%s0 + $0x4] sm:$0xf]
  %v23 = vld [vmem:[%s4] sm:$0x1]
  %v25 = vlaneseq
  %v26 = vshrl.u32 %v25, 7
  %v27 = vsub.s32 0, %v26
  %v28 = vrot.slane %v23, %v27
  %30 = vst [vmem:[#allocation2] sm:$0xff] %v28
  %31 = vst [vmem:[#allocation2 + $0x8] sm:$0xff] %v28
  %v32 = vld [vmem:[%s1] sm:$0xf]
  %v33 = vld [vmem:[%s1 + $0x4] sm:$0xf]
  %v34 = vld [vmem:[%s1 + $0x8] sm:$0xf]
  %v35 = vld [vmem:[%s1 + $0xc] sm:$0xf]
  %v36 = vld [vmem:[%s1 + $0x10] sm:$0xf]
  %v37 = vld [vmem:[%s1 + $0x14] sm:$0xf]
  %v38 = vld [vmem:[%s1 + $0x18] sm:$0xf]
  %v39 = vld [vmem:[%s1 + $0x1c] sm:$0xf]
  %v40 = vld [vmem:[%s1 + $0x20] sm:$0xf]
  %v41 = vld [vmem:[%s1 + $0x24] sm:$0xf]
  %v42 = vld [vmem:[%s1 + $0x28] sm:$0xf]
  %v43 = vld [vmem:[%s1 + $0x2c] sm:$0xf]
  %v44 = vld [vmem:[%s1 + $0x30] sm:$0xf]
  %v45 = vld [vmem:[%s1 + $0x34] sm:$0xf]
  %v46 = vld [vmem:[%s1 + $0x38] sm:$0xf]
  %v47 = vld [vmem:[%s1 + $0x3c] sm:$0xf]
  %v48 = vld [vmem:[%s2] sm:$0x1]
  %v50 = vlaneseq
  %v51 = vshrl.u32 %v50, 7
  %v52 = vsub.s32 0, %v51
  %v53 = vrot.slane %v48, %v52
  %v57 = vunpack.c.l.b16 %v21
  %v58 = vunpack.c.l.b16 %v22
  %v59 = vpack.c.b16 %v58, %v57
  %v77 = vunpack.c.l.b16 %v32
  %v78 = vunpack.c.l.b16 %v33
  %v79 = vunpack.c.l.b16 %v34
  %v80 = vunpack.c.l.b16 %v35
  %v81 = vunpack.c.l.b16 %v36
  %v82 = vunpack.c.l.b16 %v37
  %v83 = vunpack.c.l.b16 %v38
  %v84 = vunpack.c.l.b16 %v39
  %v85 = vunpack.c.l.b16 %v40
  %v86 = vunpack.c.l.b16 %v41
  %v87 = vunpack.c.l.b16 %v42
  %v88 = vunpack.c.l.b16 %v43
  %v89 = vunpack.c.l.b16 %v44
  %v90 = vunpack.c.l.b16 %v45
  %v91 = vunpack.c.l.b16 %v46
  %v92 = vunpack.c.l.b16 %v47
  %v93 = vpack.c.b16 %v78, %v77
  %v94 = vpack.c.b16 %v80, %v79
  %v95 = vpack.c.b16 %v82, %v81
  %v96 = vpack.c.b16 %v84, %v83
  %v97 = vpack.c.b16 %v86, %v85
  %v98 = vpack.c.b16 %v88, %v87
  %v99 = vpack.c.b16 %v90, %v89
  %v100 = vpack.c.b16 %v92, %v91
  %109 = vmatprep.subr.bf16.mxu0 0
  %110 = vmatpush1.bf16.msra.mxu0 %v100
  %111 = vmatprep.subr.bf16.mxu0 0
  %112 = vmatpush1.bf16.msra.mxu0 %v99
  %113 = vmatprep.subr.bf16.mxu0 0
  %114 = vmatpush1.bf16.msra.mxu0 %v98
  %115 = vmatprep.subr.bf16.mxu0 0
  %116 = vmatpush1.bf16.msra.mxu0 %v97
  %117 = vmatprep.subr.bf16.mxu0 0
  %118 = vmatpush1.bf16.msra.mxu0 %v96
  %119 = vmatprep.subr.bf16.mxu0 0
  %120 = vmatpush1.bf16.msra.mxu0 %v95
  %121 = vmatprep.subr.bf16.mxu0 0
  %122 = vmatpush1.bf16.msra.mxu0 %v94
  %123 = vmatprep.subr.bf16.mxu0 0
  %124 = vmatpush1.bf16.msra.mxu0 %v93
  %125 = vmatprep.subr.bf16.mxu0 0
  %126 = vmatpush2.bf16.msra.mxu0 0
  %127 = vmatprep.subr.bf16.mxu0 0
  %128 = vmatpush2.bf16.msra.mxu0 0
  %129 = vmatprep.subr.bf16.mxu0 0
  %130 = vmatpush2.bf16.msra.mxu0 0
  %131 = vmatprep.subr.bf16.mxu0 0
  %132 = vmatpush2.bf16.msra.mxu0 0
  %133 = vmatprep.subr.bf16.mxu0 0
  %134 = vmatpush2.bf16.msra.mxu0 0
  %135 = vmatprep.subr.bf16.mxu0 0
  %136 = vmatpush2.bf16.msra.mxu0 0
  %137 = vmatprep.subr.bf16.mxu0 0
  %138 = vmatpush2.bf16.msra.mxu0 0
  %139 = vmatprep.subr.bf16.mxu0 0
  %140 = vmatpush2.bf16.msra.mxu0 0
  %141 = vmatprep.mubr.bf16.mxu0 0
  %142 = vmatmul.mubr.bf16.gmra.mxu0 %v59
  %v143 = vpop.f32.mrf.mxu0
  %v144 = vadd.f32 %v53, %v143
  %v145 = vpop.f32.mrf.mxu0
  %v146 = vpop.f32.mrf.mxu0
  %v147 = vadd.f32 %v53, %v146
  %v148 = vpop.f32.mrf.mxu0
  %149 = vdwg.mxu0
  %v150 = vmul.f32 %v144, 0.5
  %v151 = vmul.f32 %v147, 0.5
  %v152 = vmul.f32 %v144, 0.70710677
  %v153 = vmul.f32 %v147, 0.70710677
  %v154 = verf.f32.pop %v152
  %v155 = verf.f32.pop %v153
  %v156 = vadd.f32 %v154, 1.0
  %v157 = vadd.f32 %v155, 1.0
  %v158 = vmul.f32 %v150, %v156
  %v159 = vmul.f32 %v151, %v157
  %v160 = vld [vmem:[#allocation2] sm:$0xff]
  %v161 = vld [vmem:[#allocation2 + $0x8] sm:$0xff]
  %v162 = vpack.c.bf16 %v159, %v158
  %v163 = vld [vmem:[%s3] sm:$0xf]
  %v164 = vld [vmem:[%s3 + $0x4] sm:$0xf]
  %v165 = vld [vmem:[%s3 + $0x8] sm:$0xf]
  %v166 = vld [vmem:[%s3 + $0xc] sm:$0xf]
  %v167 = vld [vmem:[%s3 + $0x10] sm:$0xf]
  %v168 = vld [vmem:[%s3 + $0x14] sm:$0xf]
  %v169 = vld [vmem:[%s3 + $0x18] sm:$0xf]
  %v170 = vld [vmem:[%s3 + $0x1c] sm:$0xf]
  %v171 = vld [vmem:[%s3 + $0x20] sm:$0xf]
  %v172 = vld [vmem:[%s3 + $0x24] sm:$0xf]
  %v173 = vld [vmem:[%s3 + $0x28] sm:$0xf]
  %v174 = vld [vmem:[%s3 + $0x2c] sm:$0xf]
  %v175 = vld [vmem:[%s3 + $0x30] sm:$0xf]
  %v176 = vld [vmem:[%s3 + $0x34] sm:$0xf]
  %v177 = vld [vmem:[%s3 + $0x38] sm:$0xf]
  %v178 = vld [vmem:[%s3 + $0x3c] sm:$0xf]
  %v195 = vunpack.c.l.b16 %v163
  %v196 = vunpack.c.l.b16 %v164
  %v197 = vunpack.c.l.b16 %v165
  %v198 = vunpack.c.l.b16 %v166
  %v199 = vunpack.c.l.b16 %v167
  %v200 = vunpack.c.l.b16 %v168
  %v201 = vunpack.c.l.b16 %v169
  %v202 = vunpack.c.l.b16 %v170
  %v203 = vunpack.c.l.b16 %v171
  %v204 = vunpack.c.l.b16 %v172
  %v205 = vunpack.c.l.b16 %v173
  %v206 = vunpack.c.l.b16 %v174
  %v207 = vunpack.c.l.b16 %v175
  %v208 = vunpack.c.l.b16 %v176
  %v209 = vunpack.c.l.b16 %v177
  %v210 = vunpack.c.l.b16 %v178
  %v211 = vpack.c.b16 %v196, %v195
  %v212 = vpack.c.b16 %v198, %v197
  %v213 = vpack.c.b16 %v200, %v199
  %v214 = vpack.c.b16 %v202, %v201
  %v215 = vpack.c.b16 %v204, %v203
  %v216 = vpack.c.b16 %v206, %v205
  %v217 = vpack.c.b16 %v208, %v207
  %v218 = vpack.c.b16 %v210, %v209
  %227 = vmatprep.subr.bf16.mxu0 0
  %228 = vmatpush1.bf16.msra.mxu0 %v218
  %229 = vmatprep.subr.bf16.mxu0 0
  %230 = vmatpush1.bf16.msra.mxu0 %v217
  %231 = vmatprep.subr.bf16.mxu0 0
  %232 = vmatpush1.bf16.msra.mxu0 %v216
  %233 = vmatprep.subr.bf16.mxu0 0
  %234 = vmatpush1.bf16.msra.mxu0 %v215
  %235 = vmatprep.subr.bf16.mxu0 0
  %236 = vmatpush1.bf16.msra.mxu0 %v214
  %237 = vmatprep.subr.bf16.mxu0 0
  %238 = vmatpush1.bf16.msra.mxu0 %v213
  %239 = vmatprep.subr.bf16.mxu0 0
  %240 = vmatpush1.bf16.msra.mxu0 %v212
  %241 = vmatprep.subr.bf16.mxu0 0
  %242 = vmatpush1.bf16.msra.mxu0 %v211
  %243 = vmatprep.subr.bf16.mxu0 0
  %244 = vmatpush2.bf16.msra.mxu0 0
  %245 = vmatprep.subr.bf16.mxu0 0
  %246 = vmatpush2.bf16.msra.mxu0 0
  %247 = vmatprep.subr.bf16.mxu0 0
  %248 = vmatpush2.bf16.msra.mxu0 0
  %249 = vmatprep.subr.bf16.mxu0 0
  %250 = vmatpush2.bf16.msra.mxu0 0
  %251 = vmatprep.subr.bf16.mxu0 0
  %252 = vmatpush2.bf16.msra.mxu0 0
  %253 = vmatprep.subr.bf16.mxu0 0
  %254 = vmatpush2.bf16.msra.mxu0 0
  %255 = vmatprep.subr.bf16.mxu0 0
  %256 = vmatpush2.bf16.msra.mxu0 0
  %257 = vmatprep.subr.bf16.mxu0 0
  %258 = vmatpush2.bf16.msra.mxu0 0
  %259 = vmatprep.mubr.bf16.mxu0 0
  %260 = vmatmul.mubr.bf16.gmra.mxu0 %v162
  %v261 = vpop.f32.mrf.mxu0
  %v262 = vadd.f32 0.0, %v261
  %v263 = vpop.f32.mrf.mxu0
  %v264 = vpop.f32.mrf.mxu0
  %v265 = vadd.f32 0.0, %v264
  %v266 = vpop.f32.mrf.mxu0
  %267 = vdwg.mxu0
  %v268 = vadd.f32 %v160, %v262
  %v269 = vadd.f32 %v161, %v265
  %270 = vst [vmem:[#allocation2] sm:$0xff] %v268
  %271 = vst [vmem:[#allocation2 + $0x8] sm:$0xff] %v269
  %v272 = vld [vmem:[#allocation2] sm:$0xff]
  %v273 = vld [vmem:[#allocation2 + $0x8] sm:$0xff]
  %274 = vst [vmem:[%s5] sm:$0xff] %v272
  %275 = vst [vmem:[%s5 + $0x8] sm:$0xff] %v273
  // Predicated region
  $region22: #{_mlp_pallas_impl.1} parent=0 // pred_check
    _
  $region23: #{_mlp_pallas_impl.1} parent=0 // pred_check_branch
    %277 = sbr.rel (0) target = $region25
  $region24: #{_mlp_pallas_impl.1} parent=0 // pred_region
    _
  $region25: #{_mlp_pallas_impl.1} parent=0 // pred_fallthru
    _
  // Predicated region
  $region26: #{_mlp_pallas_impl.1} parent=0 // pred_check
    _
  $region27: #{_mlp_pallas_impl.1} parent=0 // pred_check_branch
    %279 = sbr.rel (0) target = $region29
  $region28: #{_mlp_pallas_impl.1} parent=0 // pred_region
    _
  $region29: #{_mlp_pallas_impl.1} parent=0 // pred_fallthru
    _

// kernel: _mlp_pallas_impl.1
$region0: #{_mlp_pallas_impl.1}
  #allocation0 [shape = 'u32[]', space=smem, size = 0x4, offset = 0x4, fixed_abs, tag = 'smem constant byte address 0x4 - core index']
  #allocation1 [shape = 'u32[144,128]{1,0:T(1,128)}', space=vmem, size = 0x12000, scoped, tag = 'internal scratch']
  #allocation2 [shape = 'f32[16,128]{1,0:T(8,128)}', space=vmem, size = 0x2000, scoped, tag = 'scratch operand']
  %s0 = inlined_call_operand.vmem [shape: bf16[16,128], index: 0, kind: input, shape index: {}]
  %s1 = inlined_call_operand.vmem [shape: bf16[128,128], index: 1, kind: input, shape index: {}]
  %s2 = inlined_call_operand.vmem [shape: f32[1,128], index: 2, kind: input, shape index: {}]
  %s3 = inlined_call_operand.vmem [shape: bf16[128,128], index: 3, kind: input, shape index: {}]
  %s4 = inlined_call_operand.vmem [shape: f32[1,128], index: 4, kind: input, shape index: {}]
  %s5 = inlined_call_operand.vmem [shape: f32[16,128], index: 5, kind: output, shape index: {}]
  %s6 = sld [smem:[#allocation0]]
  $region30: #{_mlp_pallas_impl.1} parent=0
    _
  %s8 = ssub.s32 1, %s6
  %s9 = scalar_select 0, %s8, %s6
  // Predicated region
  $region2: #{_mlp_pallas_impl.1} parent=0 // pred_check
    _
  $region3: #{_mlp_pallas_impl.1} parent=0 // pred_check_branch
    %11 = sbr.rel (0) target = $region5
  $region4: #{_mlp_pallas_impl.1} parent=0 // pred_region
    _
  $region5: #{_mlp_pallas_impl.1} parent=0 // pred_fallthru
    _
  // Predicated region
  $region6: #{_mlp_pallas_impl.1} parent=0 // pred_check
    _
  $region7: #{_mlp_pallas_impl.1} parent=0 // pred_check_branch
    %13 = sbr.rel (0) target = $region9
  $region8: #{_mlp_pallas_impl.1} parent=0 // pred_region
    _
  $region9: #{_mlp_pallas_impl.1} parent=0 // pred_fallthru
    _
  // Predicated region
  $region10: #{_mlp_pallas_impl.1} parent=0 // pred_check
    _
  $region11: #{_mlp_pallas_impl.1} parent=0 // pred_check_branch
    %15 = sbr.rel (0) target = $region13
  $region12: #{_mlp_pallas_impl.1} parent=0 // pred_region
    _
  $region13: #{_mlp_pallas_impl.1} parent=0 // pred_fallthru
    _
  // Predicated region
  $region14: #{_mlp_pallas_impl.1} parent=0 // pred_check
    _
  $region15: #{_mlp_pallas_impl.1} parent=0 // pred_check_branch
    %17 = sbr.rel (0) target = $region17
  $region16: #{_mlp_pallas_impl.1} parent=0 // pred_region
    _
  $region17: #{_mlp_pallas_impl.1} parent=0 // pred_fallthru
    _
  // Predicated region
  $region18: #{_mlp_pallas_impl.1} parent=0 // pred_check
    _
  $region19: #{_mlp_pallas_impl.1} parent=0 // pred_check_branch
    %19 = sbr.rel (0) target = $region21
  $region20: #{_mlp_pallas_impl.1} parent=0 // pred_region
    _
  $region21: #{_mlp_pallas_impl.1} parent=0 // pred_fallthru
    _
  %v21 = vld [vmem:[%s0] sm:$0xf]
  %v22 = vld [vmem:[%s0 + $0x4] sm:$0xf]
  %v23 = vld [vmem:[%s4] sm:$0x1]
  %v25 = vlaneseq
  %v26 = vshrl.u32 %v25, 7
  %v27 = vsub.s32 0, %v26
  %v28 = vrot.slane %v23, %v27
  %30 = vst [vmem:[#allocation2] sm:$0xff] %v28
  %31 = vst [vmem:[#allocation2 + $0x8] sm:$0xff] %v28
  %v32 = vld [vmem:[%s1] sm:$0xf]
  %v33 = vld [vmem:[%s1 + $0x4] sm:$0xf]
  %v34 = vld [vmem:[%s1 + $0x8] sm:$0xf]
  %v35 = vld [vmem:[%s1 + $0xc] sm:$0xf]
  %v36 = vld [vmem:[%s1 + $0x10] sm:$0xf]
  %v37 = vld [vmem:[%s1 + $0x14] sm:$0xf]
  %v38 = vld [vmem:[%s1 + $0x18] sm:$0xf]
  %v39 = vld [vmem:[%s1 + $0x1c] sm:$0xf]
  %v40 = vld [vmem:[%s1 + $0x20] sm:$0xf]
  %v41 = vld [vmem:[%s1 + $0x24] sm:$0xf]
  %v42 = vld [vmem:[%s1 + $0x28] sm:$0xf]
  %v43 = vld [vmem:[%s1 + $0x2c] sm:$0xf]
  %v44 = vld [vmem:[%s1 + $0x30] sm:$0xf]
  %v45 = vld [vmem:[%s1 + $0x34] sm:$0xf]
  %v46 = vld [vmem:[%s1 + $0x38] sm:$0xf]
  %v47 = vld [vmem:[%s1 + $0x3c] sm:$0xf]
  %v48 = vld [vmem:[%s2] sm:$0x1]
  %v50 = vlaneseq
  %v51 = vshrl.u32 %v50, 7
  %v52 = vsub.s32 0, %v51
  %v53 = vrot.slane %v48, %v52
  %v57 = vunpack.c.l.b16 %v21
  %v58 = vunpack.c.l.b16 %v22
  %v59 = vpack.c.b16 %v58, %v57
  %v77 = vunpack.c.l.b16 %v32
  %v78 = vunpack.c.l.b16 %v33
  %v79 = vunpack.c.l.b16 %v34
  %v80 = vunpack.c.l.b16 %v35
  %v81 = vunpack.c.l.b16 %v36
  %v82 = vunpack.c.l.b16 %v37
  %v83 = vunpack.c.l.b16 %v38
  %v84 = vunpack.c.l.b16 %v39
  %v85 = vunpack.c.l.b16 %v40
  %v86 = vunpack.c.l.b16 %v41
  %v87 = vunpack.c.l.b16 %v42
  %v88 = vunpack.c.l.b16 %v43
  %v89 = vunpack.c.l.b16 %v44
  %v90 = vunpack.c.l.b16 %v45
  %v91 = vunpack.c.l.b16 %v46
  %v92 = vunpack.c.l.b16 %v47
  %v93 = vpack.c.b16 %v78, %v77
  %v94 = vpack.c.b16 %v80, %v79
  %v95 = vpack.c.b16 %v82, %v81
  %v96 = vpack.c.b16 %v84, %v83
  %v97 = vpack.c.b16 %v86, %v85
  %v98 = vpack.c.b16 %v88, %v87
  %v99 = vpack.c.b16 %v90, %v89
  %v100 = vpack.c.b16 %v92, %v91
  %109 = vmatprep.subr.bf16.mxu0 0
  %110 = vmatpush1.bf16.msra.mxu0 %v100
  %111 = vmatprep.subr.bf16.mxu0 0
  %112 = vmatpush1.bf16.msra.mxu0 %v99
  %113 = vmatprep.subr.bf16.mxu0 0
  %114 = vmatpush1.bf16.msra.mxu0 %v98
  %115 = vmatprep.subr.bf16.mxu0 0
  %116 = vmatpush1.bf16.msra.mxu0 %v97
  %117 = vmatprep.subr.bf16.mxu0 0
  %118 = vmatpush1.bf16.msra.mxu0 %v96
  %119 = vmatprep.subr.bf16.mxu0 0
  %120 = vmatpush1.bf16.msra.mxu0 %v95
  %121 = vmatprep.subr.bf16.mxu0 0
  %122 = vmatpush1.bf16.msra.mxu0 %v94
  %123 = vmatprep.subr.bf16.mxu0 0
  %124 = vmatpush1.bf16.msra.mxu0 %v93
  %125 = vmatprep.subr.bf16.mxu0 0
  %126 = vmatpush2.bf16.msra.mxu0 0
  %127 = vmatprep.subr.bf16.mxu0 0
  %128 = vmatpush2.bf16.msra.mxu0 0
  %129 = vmatprep.subr.bf16.mxu0 0
  %130 = vmatpush2.bf16.msra.mxu0 0
  %131 = vmatprep.subr.bf16.mxu0 0
  %132 = vmatpush2.bf16.msra.mxu0 0
  %133 = vmatprep.subr.bf16.mxu0 0
  %134 = vmatpush2.bf16.msra.mxu0 0
  %135 = vmatprep.subr.bf16.mxu0 0
  %136 = vmatpush2.bf16.msra.mxu0 0
  %137 = vmatprep.subr.bf16.mxu0 0
  %138 = vmatpush2.bf16.msra.mxu0 0
  %139 = vmatprep.subr.bf16.mxu0 0
  %140 = vmatpush2.bf16.msra.mxu0 0
  %141 = vmatprep.mubr.bf16.mxu0 0
  %142 = vmatmul.mubr.bf16.gmra.mxu0 %v59
  %v143 = vpop.f32.mrf.mxu0
  %v144 = vadd.f32 %v53, %v143
  %v145 = vpop.f32.mrf.mxu0
  %v146 = vpop.f32.mrf.mxu0
  %v147 = vadd.f32 %v53, %v146
  %v148 = vpop.f32.mrf.mxu0
  %149 = vdwg.mxu0
  %v150 = vmul.f32 %v144, 0.5
  %v151 = vmul.f32 %v147, 0.5
  %v152 = vmul.f32 %v144, 0.70710677
  %v153 = vmul.f32 %v147, 0.70710677
  %v154 = verf.f32.pop %v152
  %v155 = verf.f32.pop %v153
  %v156 = vadd.f32 %v154, 1.0
  %v157 = vadd.f32 %v155, 1.0
  %v158 = vmul.f32 %v150, %v156
  %v159 = vmul.f32 %v151, %v157
  %v160 = vld [vmem:[#allocation2] sm:$0xff]
  %v161 = vld [vmem:[#allocation2 + $0x8] sm:$0xff]
  %v162 = vpack.c.bf16 %v159, %v158
  %v163 = vld [vmem:[%s3] sm:$0xf]
  %v164 = vld [vmem:[%s3 + $0x4] sm:$0xf]
  %v165 = vld [vmem:[%s3 + $0x8] sm:$0xf]
  %v166 = vld [vmem:[%s3 + $0xc] sm:$0xf]
  %v167 = vld [vmem:[%s3 + $0x10] sm:$0xf]
  %v168 = vld [vmem:[%s3 + $0x14] sm:$0xf]
  %v169 = vld [vmem:[%s3 + $0x18] sm:$0xf]
  %v170 = vld [vmem:[%s3 + $0x1c] sm:$0xf]
  %v171 = vld [vmem:[%s3 + $0x20] sm:$0xf]
  %v172 = vld [vmem:[%s3 + $0x24] sm:$0xf]
  %v173 = vld [vmem:[%s3 + $0x28] sm:$0xf]
  %v174 = vld [vmem:[%s3 + $0x2c] sm:$0xf]
  %v175 = vld [vmem:[%s3 + $0x30] sm:$0xf]
  %v176 = vld [vmem:[%s3 + $0x34] sm:$0xf]
  %v177 = vld [vmem:[%s3 + $0x38] sm:$0xf]
  %v178 = vld [vmem:[%s3 + $0x3c] sm:$0xf]
  %v195 = vunpack.c.l.b16 %v163
  %v196 = vunpack.c.l.b16 %v164
  %v197 = vunpack.c.l.b16 %v165
  %v198 = vunpack.c.l.b16 %v166
  %v199 = vunpack.c.l.b16 %v167
  %v200 = vunpack.c.l.b16 %v168
  %v201 = vunpack.c.l.b16 %v169
  %v202 = vunpack.c.l.b16 %v170
  %v203 = vunpack.c.l.b16 %v171
  %v204 = vunpack.c.l.b16 %v172
  %v205 = vunpack.c.l.b16 %v173
  %v206 = vunpack.c.l.b16 %v174
  %v207 = vunpack.c.l.b16 %v175
  %v208 = vunpack.c.l.b16 %v176
  %v209 = vunpack.c.l.b16 %v177
  %v210 = vunpack.c.l.b16 %v178
  %v211 = vpack.c.b16 %v196, %v195
  %v212 = vpack.c.b16 %v198, %v197
  %v213 = vpack.c.b16 %v200, %v199
  %v214 = vpack.c.b16 %v202, %v201
  %v215 = vpack.c.b16 %v204, %v203
  %v216 = vpack.c.b16 %v206, %v205
  %v217 = vpack.c.b16 %v208, %v207
  %v218 = vpack.c.b16 %v210, %v209
  %227 = vmatprep.subr.bf16.mxu0 0
  %228 = vmatpush1.bf16.msra.mxu0 %v218
  %229 = vmatprep.subr.bf16.mxu0 0
  %230 = vmatpush1.bf16.msra.mxu0 %v217
  %231 = vmatprep.subr.bf16.mxu0 0
  %232 = vmatpush1.bf16.msra.mxu0 %v216
  %233 = vmatprep.subr.bf16.mxu0 0
  %234 = vmatpush1.bf16.msra.mxu0 %v215
  %235 = vmatprep.subr.bf16.mxu0 0
  %236 = vmatpush1.bf16.msra.mxu0 %v214
  %237 = vmatprep.subr.bf16.mxu0 0
  %238 = vmatpush1.bf16.msra.mxu0 %v213
  %239 = vmatprep.subr.bf16.mxu0 0
  %240 = vmatpush1.bf16.msra.mxu0 %v212
  %241 = vmatprep.subr.bf16.mxu0 0
  %242 = vmatpush1.bf16.msra.mxu0 %v211
  %243 = vmatprep.subr.bf16.mxu0 0
  %244 = vmatpush2.bf16.msra.mxu0 0
  %245 = vmatprep.subr.bf16.mxu0 0
  %246 = vmatpush2.bf16.msra.mxu0 0
  %247 = vmatprep.subr.bf16.mxu0 0
  %248 = vmatpush2.bf16.msra.mxu0 0
  %249 = vmatprep.subr.bf16.mxu0 0
  %250 = vmatpush2.bf16.msra.mxu0 0
  %251 = vmatprep.subr.bf16.mxu0 0
  %252 = vmatpush2.bf16.msra.mxu0 0
  %253 = vmatprep.subr.bf16.mxu0 0
  %254 = vmatpush2.bf16.msra.mxu0 0
  %255 = vmatprep.subr.bf16.mxu0 0
  %256 = vmatpush2.bf16.msra.mxu0 0
  %257 = vmatprep.subr.bf16.mxu0 0
  %258 = vmatpush2.bf16.msra.mxu0 0
  %259 = vmatprep.mubr.bf16.mxu0 0
  %260 = vmatmul.mubr.bf16.gmra.mxu0 %v162
  %v261 = vpop.f32.mrf.mxu0
  %v262 = vadd.f32 0.0, %v261
  %v263 = vpop.f32.mrf.mxu0
  %v264 = vpop.f32.mrf.mxu0
  %v265 = vadd.f32 0.0, %v264
  %v266 = vpop.f32.mrf.mxu0
  %267 = vdwg.mxu0
  %v268 = vadd.f32 %v160, %v262
  %v269 = vadd.f32 %v161, %v265
  %270 = vst [vmem:[#allocation2] sm:$0xff] %v268
  %271 = vst [vmem:[#allocation2 + $0x8] sm:$0xff] %v269
  %v272 = vld [vmem:[#allocation2] sm:$0xff]
  %v273 = vld [vmem:[#allocation2 + $0x8] sm:$0xff]
  %274 = vst [vmem:[%s5] sm:$0xff] %v272
  %275 = vst [vmem:[%s5 + $0x8] sm:$0xff] %v273
  // Predicated region
  $region22: #{_mlp_pallas_impl.1} parent=0 // pred_check
    _
  $region23: #{_mlp_pallas_impl.1} parent=0 // pred_check_branch
    %277 = sbr.rel (0) target = $region25
  $region24: #{_mlp_pallas_impl.1} parent=0 // pred_region
    _
  $region25: #{_mlp_pallas_impl.1} parent=0 // pred_fallthru
    _
  // Predicated region
  $region26: #{_mlp_pallas_impl.1} parent=0 // pred_check
    _
  $region27: #{_mlp_pallas_impl.1} parent=0 // pred_check_branch
    %279 = sbr.rel (0) target = $region29
  $region28: #{_mlp_pallas_impl.1} parent=0 // pred_region
    _
  $region29: #{_mlp_pallas_impl.1} parent=0 // pred_fallthru
    _

</llo_original>
